<compile_context>
chip_gen: v5e
topology: v5e:2x2
jax: 0.10.0
libtpu: 0.0.40
codegen_flags: <defaults>
</compile_context>

<pallas_src>
import jax
import jax.numpy as jnp
from jax.experimental import pallas as pl
from jax.experimental.pallas import tpu as pltpu


def _make_chunked_copy_kernel(chunk_bounds):
    """Kernel: N outstanding HBM->HBM DMAs (start all, then wait all)."""

    def kernel(x_ref, o_ref, sem):
        copies = []
        for i, (start, size) in enumerate(chunk_bounds):
            cp = pltpu.make_async_copy(
                x_ref.at[pl.ds(start, size)],
                o_ref.at[pl.ds(start, size)],
                sem.at[i],
            )
            cp.start()
            copies.append(cp)
        for cp in copies:
            cp.wait()

    return kernel


def _default_num_chunks(batch):
    """Per-chip default outstanding-DMA count (clamped to the batch size)."""
    kind = ""
    try:
        kind = jax.devices()[0].device_kind.lower()
    except Exception:  # pragma: no cover - defensive
        pass
    if "v7" in kind:
        n = 8          # v7x: feed ~3.2 TB/s HBM with many outstanding DMAs
    elif "v6" in kind:
        n = 4          # v6e
    else:
        n = 2          # v5e: contiguous copies saturate easily; keep it small
    return max(1, min(n, batch))


def _materialize_copy(x, num_chunks=None):
    """Identity copy of 2-D `x` via chunked HBM->HBM DMAs (no VMEM round trip)."""
    b, _ = x.shape
    if num_chunks is None:
        num_chunks = _default_num_chunks(b)
    num_chunks = max(1, min(int(num_chunks), b))

    # Static chunk bounds along the leading (batch) dimension.
    base, rem = divmod(b, num_chunks)
    chunk_bounds = []
    start = 0
    for i in range(num_chunks):
        size = base + (1 if i < rem else 0)
        if size == 0:
            continue
        chunk_bounds.append((start, size))
        start += size
    n_dmas = len(chunk_bounds)

    nbytes = x.size * jnp.dtype(x.dtype).itemsize
    return pl.pallas_call(
        _make_chunked_copy_kernel(chunk_bounds),
        out_shape=jax.ShapeDtypeStruct(x.shape, x.dtype),
        in_specs=[pl.BlockSpec(memory_space=pl.ANY)],
        out_specs=pl.BlockSpec(memory_space=pl.ANY),
        scratch_shapes=[pltpu.SemaphoreType.DMA((n_dmas,))],
        cost_estimate=pl.CostEstimate(
            flops=0, transcendentals=0, bytes_accessed=2 * nbytes
        ),
    )(x)


def linear2conv(
    x,
    out_ch,
    width,
    height,
    *,
    materialize=False,
    num_chunks=None,
    pallas_min_bytes=1 << 20,
):
    """x: (B, out_ch*width*height) -> (B, out_ch, width, height).

    Default: zero-cost row-major metadata reshape (exact torch.reshape
    semantics).  With materialize=True a freshly-materialized buffer is
    returned; large tensors use the Pallas chunked HBM->HBM DMA kernel, small
    tensors (< pallas_min_bytes) use a plain fusable XLA copy.
    """
    b, n = x.shape
    assert n == out_ch * width * height, "feature dim must equal out_ch*width*height"

    if not materialize:
        # Pure metadata reshape — identical to torch's x.reshape(B, C, W, H).
        return x.reshape(b, out_ch, width, height)

    nbytes = x.size * jnp.dtype(x.dtype).itemsize
    if nbytes < pallas_min_bytes:
        # Custom-call + DMA-setup overhead dwarfs the copy for small tensors.
        return jnp.copy(x).reshape(b, out_ch, width, height)

    # Copy the original 2-D array, reshape the (metadata-only) result after.
    return _materialize_copy(x, num_chunks).reshape(b, out_ch, width, height)


if __name__ == "__main__":
    # Module config: Linear2Conv(out_ch=4, width=16, height=16)
    out_ch, width, height = 4, 16, 16
    batch = 2

    key = jax.random.PRNGKey(0)
    x = jax.random.normal(key, (batch, out_ch * width * height), dtype=jnp.float32)
    y_ref = x.reshape(batch, out_ch, width, height)

    # Fast path (what a real model should use): free metadata reshape.
    y_fast = linear2conv(x, out_ch, width, height)

    # Materialize path with default threshold (tensor is tiny -> plain XLA copy).
    y_small = linear2conv(x, out_ch, width, height, materialize=True)

    # Pallas kernel path: force the chunked-DMA kernel to run once.
    y_pallas = linear2conv(
        x, out_ch, width, height, materialize=True, pallas_min_bytes=0
    )
    jax.block_until_ready(y_pallas)

    assert y_pallas.shape == (batch, out_ch, width, height)
    assert jnp.array_equal(y_fast, y_ref)
    assert jnp.array_equal(y_small, y_ref)
    assert jnp.array_equal(y_pallas, y_ref)

    print("KERNEL_OK")
</pallas_src>

<mosaic_0001>
module attributes {stable_mosaic.version = 11 : i64} {
  func.func @kernel(%arg0: memref<2x1024xf32, #tpu.memory_space<any>>, %arg1: memref<2x1024xf32, #tpu.memory_space<any>>, %arg2: memref<2x!tpu.dma_semaphore, #tpu.memory_space<semaphore_mem>>) attributes {dimension_semantics = [], scalar_prefetch = 0 : i64, scratch_operands = 1 : i64, tpu.core_type = #tpu.core_type<tc>} {
    %c0_i32 = arith.constant 0 : i32
    %c0_i32_0 = arith.constant 0 : i32
    %c0_i32_1 = arith.constant 0 : i32
    %0 = tpu.memref_slice %arg0[%c0_i32_0, %c0_i32_1] : memref<2x1024xf32, #tpu.memory_space<any>> -> memref<1x1024xf32, #tpu.memory_space<any>>
    %c0_i32_2 = arith.constant 0 : i32
    %c0_i32_3 = arith.constant 0 : i32
    %1 = tpu.memref_slice %arg1[%c0_i32_2, %c0_i32_3] : memref<2x1024xf32, #tpu.memory_space<any>> -> memref<1x1024xf32, #tpu.memory_space<any>>
    %2 = tpu.memref_slice %arg2[%c0_i32] : memref<2x!tpu.dma_semaphore, #tpu.memory_space<semaphore_mem>> -> memref<1x!tpu.dma_semaphore, #tpu.memory_space<semaphore_mem>>
    %3 = tpu.memref_squeeze %2 : memref<1x!tpu.dma_semaphore, #tpu.memory_space<semaphore_mem>> -> memref<!tpu.dma_semaphore, #tpu.memory_space<semaphore_mem>>
    tpu.enqueue_dma source(%0 : memref<1x1024xf32, #tpu.memory_space<any>>) target(%1 : memref<1x1024xf32, #tpu.memory_space<any>>) target_semaphore(%3 : memref<!tpu.dma_semaphore, #tpu.memory_space<semaphore_mem>>)
    %c1_i32 = arith.constant 1 : i32
    %c1_i32_4 = arith.constant 1 : i32
    %c0_i32_5 = arith.constant 0 : i32
    %4 = tpu.memref_slice %arg0[%c1_i32_4, %c0_i32_5] : memref<2x1024xf32, #tpu.memory_space<any>> -> memref<1x1024xf32, #tpu.memory_space<any>>
    %c1_i32_6 = arith.constant 1 : i32
    %c0_i32_7 = arith.constant 0 : i32
    %5 = tpu.memref_slice %arg1[%c1_i32_6, %c0_i32_7] : memref<2x1024xf32, #tpu.memory_space<any>> -> memref<1x1024xf32, #tpu.memory_space<any>>
    %6 = tpu.memref_slice %arg2[%c1_i32] : memref<2x!tpu.dma_semaphore, #tpu.memory_space<semaphore_mem>> -> memref<1x!tpu.dma_semaphore, #tpu.memory_space<semaphore_mem>>
    %7 = tpu.memref_squeeze %6 : memref<1x!tpu.dma_semaphore, #tpu.memory_space<semaphore_mem>> -> memref<!tpu.dma_semaphore, #tpu.memory_space<semaphore_mem>>
    tpu.enqueue_dma source(%4 : memref<1x1024xf32, #tpu.memory_space<any>>) target(%5 : memref<1x1024xf32, #tpu.memory_space<any>>) target_semaphore(%7 : memref<!tpu.dma_semaphore, #tpu.memory_space<semaphore_mem>>)
    %c0_i32_8 = arith.constant 0 : i32
    %c0_i32_9 = arith.constant 0 : i32
    %c0_i32_10 = arith.constant 0 : i32
    %8 = tpu.memref_slice %arg0[%c0_i32_9, %c0_i32_10] : memref<2x1024xf32, #tpu.memory_space<any>> -> memref<1x1024xf32, #tpu.memory_space<any>>
    %c0_i32_11 = arith.constant 0 : i32
    %c0_i32_12 = arith.constant 0 : i32
    %9 = tpu.memref_slice %arg1[%c0_i32_11, %c0_i32_12] : memref<2x1024xf32, #tpu.memory_space<any>> -> memref<1x1024xf32, #tpu.memory_space<any>>
    %10 = tpu.memref_slice %arg2[%c0_i32_8] : memref<2x!tpu.dma_semaphore, #tpu.memory_space<semaphore_mem>> -> memref<1x!tpu.dma_semaphore, #tpu.memory_space<semaphore_mem>>
    %11 = tpu.memref_squeeze %10 : memref<1x!tpu.dma_semaphore, #tpu.memory_space<semaphore_mem>> -> memref<!tpu.dma_semaphore, #tpu.memory_space<semaphore_mem>>
    tpu.wait_dma2 semaphore(%11 : memref<!tpu.dma_semaphore, #tpu.memory_space<semaphore_mem>>) src(%8 : memref<1x1024xf32, #tpu.memory_space<any>>) dst(%9 : memref<1x1024xf32, #tpu.memory_space<any>>)
    %c1_i32_13 = arith.constant 1 : i32
    %c1_i32_14 = arith.constant 1 : i32
    %c0_i32_15 = arith.constant 0 : i32
    %12 = tpu.memref_slice %arg0[%c1_i32_14, %c0_i32_15] : memref<2x1024xf32, #tpu.memory_space<any>> -> memref<1x1024xf32, #tpu.memory_space<any>>
    %c1_i32_16 = arith.constant 1 : i32
    %c0_i32_17 = arith.constant 0 : i32
    %13 = tpu.memref_slice %arg1[%c1_i32_16, %c0_i32_17] : memref<2x1024xf32, #tpu.memory_space<any>> -> memref<1x1024xf32, #tpu.memory_space<any>>
    %14 = tpu.memref_slice %arg2[%c1_i32_13] : memref<2x!tpu.dma_semaphore, #tpu.memory_space<semaphore_mem>> -> memref<1x!tpu.dma_semaphore, #tpu.memory_space<semaphore_mem>>
    %15 = tpu.memref_squeeze %14 : memref<1x!tpu.dma_semaphore, #tpu.memory_space<semaphore_mem>> -> memref<!tpu.dma_semaphore, #tpu.memory_space<semaphore_mem>>
    tpu.wait_dma2 semaphore(%15 : memref<!tpu.dma_semaphore, #tpu.memory_space<semaphore_mem>>) src(%12 : memref<1x1024xf32, #tpu.memory_space<any>>) dst(%13 : memref<1x1024xf32, #tpu.memory_space<any>>)
    return
  }
}

</mosaic_0001>

<llo_original>
// kernel: tpu_custom_call.1
$region0: #{tpu_custom_call.1}
  #allocation0 [shape = 'u32[]', space=smem, size = 0x4, offset = 0x4, fixed_abs, tag = 'smem constant byte address 0x4 - core index']
  #allocation1 [shape = 'u32[72,128]{1,0:T(1,128)}', space=vmem, size = 0x9000, scoped, tag = 'internal scratch']
  #allocation2 [shape = 's32[2]{0}', space=sflag, size = 0x8, scoped, tag = 'scratch operand']
  #allocation3 [shape = 's32[]', space=sflag, size = 0x4, offset = 0, fixed_abs, tag = 'sflag constant byte address 0x0 - dummy sync flag']
  #allocation5 [shape = 's32[]', space=sflag, size = 0x4, offset = 0, fixed_abs, tag = 'sflag constant byte address 0x0 - dummy sync flag']
  %s0 = inlined_call_operand.hbm [shape: f32[2,1024], index: 0, kind: input, shape index: {}]
  %s1 = inlined_call_operand.hbm [shape: f32[2,1024], index: 1, kind: output, shape index: {}]
  %s2 = sld [smem:[#allocation0]]
  $region2: #{tpu_custom_call.1} parent=0
    _
  %s4 = ssub.s32 1, %s2
  %s5 = scalar_select 0, %s4, %s2
  $region1: #{tpu_custom_call.1} parent=0
    #allocation4 [shape = 'u32[3]{0}', space=smem, size = 0xc, scoped, tag = 'DMA stride descriptor']
    #allocation6 [shape = 'u32[3]{0}', space=smem, size = 0xc, scoped, tag = 'DMA stride descriptor']
    %s7 = sshll.u32 1, 14
    %s8 = sxor.u32 4294967295, %s7
    %s10 = sshll.u32 %s0, 4
    %s11 = int_to_ptr.hbm [resolvable:$true] %s10
    %s12 = sshll.u32 %s1, 4
    %s13 = int_to_ptr.hbm [resolvable:$true] %s12
    %17 = sst [smem:[#allocation4]] 32
    %s18 = scalar_lea.smem [#allocation4], 1
    %19 = sst [smem:[%s18]] 32
    %s20 = scalar_lea.smem [#allocation4], 2
    %21 = sst [smem:[%s20]] 1
    %23 = dma.general %s11, 128, %s13, [#allocation2], [#allocation3], [#allocation4], 0, 0
    %s24 = scalar_lea.hbm %s0, 1
    %s25 = scalar_lea.hbm %s1, 1
    %s26 = scalar_lea.sflag [#allocation2], 1
    %s28 = sshll.u32 1, 14
    %s29 = sxor.u32 4294967295, %s28
    %s31 = sshll.u32 %s24, 4
    %s32 = int_to_ptr.hbm [resolvable:$true] %s31
    %s33 = sshll.u32 %s25, 4
    %s34 = int_to_ptr.hbm [resolvable:$true] %s33
    %38 = sst [smem:[#allocation6]] 32
    %s39 = scalar_lea.smem [#allocation6], 1
    %40 = sst [smem:[%s39]] 32
    %s41 = scalar_lea.smem [#allocation6], 2
    %42 = sst [smem:[%s41]] 1
    %44 = dma.general %s32, 128, %s34, %s26, [#allocation5], [#allocation6], 0, 0
    %s45 = smul.u32 1, 8
    %s46 = sshll.u32 %s45, 4
    %47 = dma.done [#allocation2], %s46
    %s48 = sshll.u32 %s45, 4
    %49 = dma.done %s26, %s48
  %50 = vsyncmov [#allocation2]
  %s51 = vpop.sfrf %50
  %p52 = scmp.eq.s32.totalorder %s51, 0
  %p53 = pneg %p52
  %55 = shalt.err (%p53)
  %s56 = scalar_lea.sflag [#allocation2], 1
  %57 = vsyncmov %s56
  %s58 = vpop.sfrf %57
  %p59 = scmp.eq.s32.totalorder %s58, 0
  %p60 = pneg %p59
  %62 = shalt.err (%p60)

</llo_original>
